<compile_context>
chip_gen: v5e
topology: v5e:2x2
jax: 0.10.0
libtpu: 0.0.40
codegen_flags: <defaults>
</compile_context>

<pallas_src>
import functools
import math

import jax
import jax.numpy as jnp
from jax.experimental import pallas as pl
from jax.experimental.pallas import tpu as pltpu

LANE = 128     # TPU lane width: pad weight/output lane dims to a multiple of this
SUBLANE = 8    # f32 sublane quantum for the batch (second-to-last) dim


def _round_up(x, m):
    return ((x + m - 1) // m) * m


def _vmem_budget_bytes() -> int:
    """~3/4 of physical VMEM: leaves headroom for Mosaic-internal scratch.

    v5e/v6e (128 MiB) -> 96 MiB budget; v7x (64 MiB) -> 48 MiB budget.
    """
    try:
        phys = int(pltpu.get_tpu_info().vmem_capacity_bytes)
    except Exception:
        phys = 64 * 1024 * 1024        # conservative fallback: assume v7x
    return (phys * 3) // 4


_VMEM_BUDGET = _vmem_budget_bytes()


def mlp_kernel(x_ref, w1_ref, b1_ref, w2_ref, b2_ref, o_ref):
    # Cast x to bf16 in-kernel (free VPU work hidden under the MXU); both
    # matmuls accumulate in f32 via preferred_element_type; bias add + ReLU
    # stay in f32 (native VPU path on all generations, incl. v5e).
    x = x_ref[...].astype(jnp.bfloat16)
    h = jnp.dot(x, w1_ref[...], preferred_element_type=jnp.float32)
    h = jnp.maximum(h + b1_ref[...], 0.0)
    o = jnp.dot(h.astype(jnp.bfloat16), w2_ref[...],
                preferred_element_type=jnp.float32)
    o_ref[...] = (o + b2_ref[...]).astype(o_ref.dtype)


def pad_params(w1, b1, w2, b2):
    """One-time (init-time) lane padding + bf16 cast of the weights.

    w1: (n_feature, n_hidden), b1: (1, n_hidden)
    w2: (n_hidden, n_output),  b2: (1, n_output)
    Returns (w1_p, b1_p, w2_p, b2_p) with hidden/output lane dims padded to 128.
    Zero padding is semantics-preserving: padded hidden units get weight 0 and
    bias 0 -> relu(0)=0 -> multiply zero rows of W2; padded output lanes are
    sliced off in net_forward.
    """
    n_feature, n_hidden = w1.shape
    n_output = w2.shape[1]
    h_p = _round_up(n_hidden, LANE)
    o_p = _round_up(n_output, LANE)
    w1_p = jnp.pad(w1, ((0, 0), (0, h_p - n_hidden))).astype(jnp.bfloat16)
    b1_p = jnp.pad(b1, ((0, 0), (0, h_p - n_hidden))).astype(jnp.float32)
    w2_p = jnp.pad(w2, ((0, h_p - n_hidden), (0, o_p - n_output))).astype(jnp.bfloat16)
    b2_p = jnp.pad(b2, ((0, 0), (0, o_p - n_output))).astype(jnp.float32)
    return w1_p, b1_p, w2_p, b2_p


@functools.partial(jax.jit, static_argnames=("n_output", "block_b"))
def net_forward(x, w1_p, b1_p, w2_p, b2_p, *, n_output, block_b=1024):
    """Forward pass of Net: relu(x @ w1 + b1) @ w2 + b2.

    x      : (B, n_feature) float32 (unpadded)
    w1_p.. : padded bf16/f32 params from pad_params() (in, out) layout.
    """
    B, n_feature = x.shape
    h_p = w1_p.shape[1]
    o_p = w2_p.shape[1]

    # ---- batch tiling ---------------------------------------------------------
    block_b = max(SUBLANE, _round_up(block_b, SUBLANE))
    b_min = _round_up(B, SUBLANE)
    if b_min <= SUBLANE:
        tb = b_min                                    # one tiny tile
    elif b_min <= block_b:
        # Whole batch would fit in one tile: split into 2 grid steps so v7x's
        # two TensorCores both get work (harmless ~0.35us extra on v5e/v6e).
        tb = _round_up(pl.cdiv(b_min, 2), SUBLANE)
    else:
        tb = block_b                                  # already >= 2 steps
    b_p = _round_up(b_min, tb)
    grid = (b_p // tb,)

    if b_p > B:   # pad only the batch (sublane) dim of x; feature dim untouched
        x = jnp.pad(x, ((0, b_p - B), (0, 0)))

    # ---- VMEM budget (actual need, with headroom, clamped to chip budget) -----
    vmem_need = (
        2 * tb * n_feature * 4                         # x tile, double-buffered f32
        + 2 * tb * o_p * 4                             # out tile, double-buffered f32
        + (n_feature * h_p + h_p * o_p) * 2            # bf16 weights, single-buffered
        + (h_p + o_p) * 4                              # f32 biases
        + tb * (n_feature * 2 + h_p * 6 + o_p * 4)     # in-kernel temporaries
    )
    vmem_limit = int(min(max(2 * vmem_need + (4 << 20), 32 << 20), _VMEM_BUDGET))
    # TODO(synk): add a hidden-dim ("arbitrary") grid axis with an f32 accumulator
    # for models where the resident bf16 weights exceed the v7x VMEM budget.

    flops = 2 * b_p * (n_feature * h_p + h_p * o_p)
    bytes_accessed = (b_p * n_feature * 4
                      + (n_feature * h_p + h_p * o_p) * 2
                      + (h_p + o_p) * 4
                      + b_p * o_p * 4)

    resident = dict(pipeline_mode=pl.Buffered(1))      # fetched once, no 2nd copy

    out_p = pl.pallas_call(
        mlp_kernel,
        out_shape=jax.ShapeDtypeStruct((b_p, o_p), jnp.float32),
        grid=grid,
        in_specs=[
            pl.BlockSpec((tb, n_feature), lambda i: (i, 0)),            # x: batch-tiled
            pl.BlockSpec((n_feature, h_p), lambda i: (0, 0), **resident),  # W1
            pl.BlockSpec((1, h_p), lambda i: (0, 0), **resident),          # b1
            pl.BlockSpec((h_p, o_p), lambda i: (0, 0), **resident),        # W2
            pl.BlockSpec((1, o_p), lambda i: (0, 0), **resident),          # b2
        ],
        out_specs=pl.BlockSpec((tb, o_p), lambda i: (i, 0)),
        compiler_params=pltpu.CompilerParams(
            # batch axis is embarrassingly parallel -> shards across v7x's two
            # TensorCores; no-op on single-TC v5e/v6e.
            dimension_semantics=("parallel",),
            vmem_limit_bytes=vmem_limit,
        ),
        cost_estimate=pl.CostEstimate(
            flops=flops, transcendentals=0, bytes_accessed=bytes_accessed),
    )(x, w1_p, b1_p, w2_p, b2_p)

    return out_p[:B, :n_output]


def init_params(key, n_feature, n_hidden, n_output):
    """Deterministic init mimicking torch.nn.Linear default (uniform +/- 1/sqrt(fan_in))."""
    k1, k2, k3, k4 = jax.random.split(key, 4)
    bound1 = 1.0 / math.sqrt(n_feature)
    bound2 = 1.0 / math.sqrt(n_hidden)
    # Stored directly in (in, out) layout == PyTorch weight.T
    w1 = jax.random.uniform(k1, (n_feature, n_hidden), jnp.float32, -bound1, bound1)
    b1 = jax.random.uniform(k2, (1, n_hidden), jnp.float32, -bound1, bound1)
    w2 = jax.random.uniform(k3, (n_hidden, n_output), jnp.float32, -bound2, bound2)
    b2 = jax.random.uniform(k4, (1, n_output), jnp.float32, -bound2, bound2)
    return w1, b1, w2, b2


if __name__ == "__main__":
    n_feature, n_hidden, n_output = 32, 64, 16
    batch = 8

    key = jax.random.PRNGKey(0)
    kx, kp = jax.random.split(key)
    x = jax.random.normal(kx, (batch, n_feature), jnp.float32)
    w1, b1, w2, b2 = init_params(kp, n_feature, n_hidden, n_output)

    # One-time padding/cast of parameters (hoisted out of the per-call path).
    w1_p, b1_p, w2_p, b2_p = pad_params(w1, b1, w2, b2)

    out = net_forward(x, w1_p, b1_p, w2_p, b2_p, n_output=n_output)
    out = jax.block_until_ready(out)
    assert out.shape == (batch, n_output)

    # Reference in plain JAX with the same bf16 quantization of x/w/h and f32
    # accumulation (mirrors the kernel's numerics up to summation order).
    bf = lambda a: a.astype(jnp.bfloat16).astype(jnp.float32)
    h_ref = jnp.maximum(bf(x) @ bf(w1) + b1, 0.0)
    ref = bf(h_ref) @ bf(w2) + b2
    assert jnp.allclose(out, ref, atol=1e-3, rtol=1e-3), (
        float(jnp.max(jnp.abs(out - ref))))

    # Loose check against the full-f32 reference (bf16 rounding error only).
    ref_f32 = jnp.maximum(x @ w1 + b1, 0.0) @ w2 + b2
    assert jnp.allclose(out, ref_f32, atol=5e-2, rtol=5e-2)

    print("KERNEL_OK")
</pallas_src>

<mosaic_0001>
module attributes {stable_mosaic.version = 11 : i64} {
  func.func @mlp_kernel(%arg0: i32, %arg1: memref<8x32xf32, #tpu.memory_space<vmem>>, %arg2: memref<32x128xbf16, #tpu.memory_space<vmem>>, %arg3: memref<1x128xf32, #tpu.memory_space<vmem>>, %arg4: memref<128x128xbf16, #tpu.memory_space<vmem>>, %arg5: memref<1x128xf32, #tpu.memory_space<vmem>>, %arg6: memref<8x128xf32, #tpu.memory_space<vmem>>) attributes {dimension_semantics = [#tpu.dimension_semantics<parallel>], iteration_bounds = array<i64: 1>, scalar_prefetch = 0 : i64, scratch_operands = 0 : i64, tpu.core_type = #tpu.core_type<tc>, window_params = [{transform_indices = @transform_0, window_bounds = array<i64: 8, 32>}, {pipeline_mode = #tpu.pipeline_mode<synchronous>, transform_indices = @transform_1, window_bounds = array<i64: 32, 128>}, {pipeline_mode = #tpu.pipeline_mode<synchronous>, transform_indices = @transform_2, window_bounds = array<i64: 1, 128>}, {pipeline_mode = #tpu.pipeline_mode<synchronous>, transform_indices = @transform_3, window_bounds = array<i64: 128, 128>}, {pipeline_mode = #tpu.pipeline_mode<synchronous>, transform_indices = @transform_4, window_bounds = array<i64: 1, 128>}, {transform_indices = @transform_5, window_bounds = array<i64: 8, 128>}]} {
    %c0 = arith.constant 0 : index
    %c0_0 = arith.constant 0 : index
    %0 = vector.load %arg1[%c0, %c0_0] : memref<8x32xf32, #tpu.memory_space<vmem>>, vector<8x32xf32>
    %1 = arith.truncf %0 : vector<8x32xf32> to vector<8x32xbf16>
    %c0_1 = arith.constant 0 : index
    %c0_2 = arith.constant 0 : index
    %2 = vector.load %arg2[%c0_1, %c0_2] : memref<32x128xbf16, #tpu.memory_space<vmem>>, vector<32x128xbf16>
    %cst = arith.constant dense<0.000000e+00> : vector<8x128xf32>
    %3 = tpu.matmul %1, %2, %cst {dimension_numbers = #tpu.dot_dimension_numbers<[1], [0], [0], [1], [0, 0, 1, 1], [], []>} : vector<8x32xbf16>, vector<32x128xbf16>, vector<8x128xf32> -> vector<8x128xf32>
    %c0_3 = arith.constant 0 : index
    %c0_4 = arith.constant 0 : index
    %4 = vector.load %arg3[%c0_3, %c0_4] : memref<1x128xf32, #tpu.memory_space<vmem>>, vector<1x128xf32>
    %5 = vector.broadcast %4 : vector<1x128xf32> to vector<8x128xf32>
    %6 = arith.addf %3, %5 : vector<8x128xf32>
    %cst_5 = arith.constant 0.000000e+00 : f32
    %7 = vector.broadcast %cst_5 : f32 to vector<8x128xf32>
    %8 = arith.maximumf %6, %7 : vector<8x128xf32>
    %9 = arith.truncf %8 : vector<8x128xf32> to vector<8x128xbf16>
    %c0_6 = arith.constant 0 : index
    %c0_7 = arith.constant 0 : index
    %10 = vector.load %arg4[%c0_6, %c0_7] : memref<128x128xbf16, #tpu.memory_space<vmem>>, vector<128x128xbf16>
    %cst_8 = arith.constant dense<0.000000e+00> : vector<8x128xf32>
    %11 = tpu.matmul %9, %10, %cst_8 {dimension_numbers = #tpu.dot_dimension_numbers<[1], [0], [0], [1], [0, 0, 1, 1], [], []>} : vector<8x128xbf16>, vector<128x128xbf16>, vector<8x128xf32> -> vector<8x128xf32>
    %c0_9 = arith.constant 0 : index
    %c0_10 = arith.constant 0 : index
    %12 = vector.load %arg5[%c0_9, %c0_10] : memref<1x128xf32, #tpu.memory_space<vmem>>, vector<1x128xf32>
    %13 = vector.broadcast %12 : vector<1x128xf32> to vector<8x128xf32>
    %14 = arith.addf %11, %13 : vector<8x128xf32>
    %c0_11 = arith.constant 0 : index
    %c0_12 = arith.constant 0 : index
    %15 = vector.load %arg6[%c0_11, %c0_12] : memref<8x128xf32, #tpu.memory_space<vmem>>, vector<8x128xf32>
    tpu.vector_store %arg6[%c0_11, %c0_12], %14 {strides = array<i32>} : memref<8x128xf32, #tpu.memory_space<vmem>>, vector<8x128xf32>,
    return
  }
  func.func @transform_0(%arg0: i32) -> (i32, i32) {
    %c0_i32 = arith.constant 0 : i32
    %c0_i32_0 = arith.constant 0 : i32
    return %arg0, %c0_i32 : i32, i32
  }
  func.func @transform_1(%arg0: i32) -> (i32, i32) {
    %c0_i32 = arith.constant 0 : i32
    %c0_i32_0 = arith.constant 0 : i32
    %c0_i32_1 = arith.constant 0 : i32
    return %c0_i32, %c0_i32_0 : i32, i32
  }
  func.func @transform_2(%arg0: i32) -> (i32, i32) {
    %c0_i32 = arith.constant 0 : i32
    %c0_i32_0 = arith.constant 0 : i32
    %c0_i32_1 = arith.constant 0 : i32
    return %c0_i32, %c0_i32_0 : i32, i32
  }
  func.func @transform_3(%arg0: i32) -> (i32, i32) {
    %c0_i32 = arith.constant 0 : i32
    %c0_i32_0 = arith.constant 0 : i32
    %c0_i32_1 = arith.constant 0 : i32
    return %c0_i32, %c0_i32_0 : i32, i32
  }
  func.func @transform_4(%arg0: i32) -> (i32, i32) {
    %c0_i32 = arith.constant 0 : i32
    %c0_i32_0 = arith.constant 0 : i32
    %c0_i32_1 = arith.constant 0 : i32
    return %c0_i32, %c0_i32_0 : i32, i32
  }
  func.func @transform_5(%arg0: i32) -> (i32, i32) {
    %c0_i32 = arith.constant 0 : i32
    %c0_i32_0 = arith.constant 0 : i32
    return %arg0, %c0_i32 : i32, i32
  }
}

</mosaic_0001>

<llo_original>
// kernel: net_forward.1
$region0: #{net_forward.1}
  #allocation0 [shape = 'u32[]', space=smem, size = 0x4, offset = 0x4, fixed_abs, tag = 'smem constant byte address 0x4 - core index']
  #allocation1 [shape = 'u32[72,128]{1,0:T(1,128)}', space=vmem, size = 0x9000, scoped, tag = 'internal scratch']
  %s0 = inlined_call_operand.hbm [shape: f32[8,32], index: 0, kind: input, shape index: {}]
  %s1 = inlined_call_operand.hbm [shape: bf16[32,128], index: 1, kind: input, shape index: {}]
  %s2 = inlined_call_operand.vmem [shape: f32[1,128], index: 2, kind: input, shape index: {}]
  %s3 = inlined_call_operand.hbm [shape: bf16[128,128], index: 3, kind: input, shape index: {}]
  %s4 = inlined_call_operand.vmem [shape: f32[1,128], index: 4, kind: input, shape index: {}]
  %s5 = inlined_call_operand.hbm [shape: f32[8,128], index: 5, kind: output, shape index: {}]
  %s6 = sld [smem:[#allocation0]]
  $region42: #{net_forward.1} parent=0
    _
  %s8 = ssub.s32 1, %s6
  %s9 = scalar_select 0, %s8, %s6
  $region1: #{net_forward.1} parent=0
    #allocation2 [shape = 'u8[4096]{0}', space=vmem, size = 0x1000, scoped, tag = 'input window, operand 0, single buffered']
    #allocation3 [shape = 's32[1]{0}', space=sflag, size = 0x4, scoped, tag = 'scoped memory for net_forward.1']
    #allocation4 [shape = 's32[1]{0}', space=sflag, size = 0x4, scoped, tag = 'scoped memory for net_forward.1']
    #allocation5 [shape = 'u8[8192]{0}', space=vmem, size = 0x2000, scoped, tag = 'input window, operand 1, single buffered']
    #allocation6 [shape = 's32[1]{0}', space=sflag, size = 0x4, scoped, tag = 'scoped memory for net_forward.1']
    #allocation7 [shape = 'u8[32768]{0}', space=vmem, size = 0x8000, scoped, tag = 'input window, operand 3, single buffered']
    #allocation8 [shape = 'u8[4096]{0}', space=vmem, size = 0x1000, scoped, tag = 'output window, operand 0, single buffered']
    %10 = vsyncpa [#allocation3], 0
    %11 = vsyncpa [#allocation6], 0
    %12 = vsyncpa [#allocation4], 0
    // Predicated region
    $region2: #{net_forward.1} parent=1 // pred_check
      _
    $region3: #{net_forward.1} parent=1 // pred_check_branch
      %14 = sbr.rel (0) target = $region5
    $region4: #{net_forward.1} parent=1 // pred_region
      %16 = vsyncadd [#allocation3], 0
      %s18 = sshll.u32 %s0, 4
      %s19 = int_to_ptr.hbm [resolvable:$true] %s18
      %s20 = sshll.u32 [#allocation2], 4
      %s21 = int_to_ptr.vmem [resolvable:$true] %s20
      %23 = dma.hbm_to_vmem [thread:$0]  %s19, 128, %s21, [#allocation3]
    $region5: #{net_forward.1} parent=1 // pred_fallthru
      _
    // Predicated region
    $region6: #{net_forward.1} parent=1 // pred_check
      _
    $region7: #{net_forward.1} parent=1 // pred_check_branch
      %25 = sbr.rel (0) target = $region9
    $region8: #{net_forward.1} parent=1 // pred_region
      %27 = vsyncadd [#allocation6], 0
      %s28 = sshll.u32 %s1, 4
      %s29 = int_to_ptr.hbm [resolvable:$true] %s28
      %s30 = sshll.u32 [#allocation5], 4
      %s31 = int_to_ptr.vmem [resolvable:$true] %s30
      %36 = dma.hbm_to_vmem [thread:$0]  %s29, 256, %s31, [#allocation6], 64, 64, 4
    $region9: #{net_forward.1} parent=1 // pred_fallthru
      _
    // Predicated region
    $region10: #{net_forward.1} parent=1 // pred_check
      _
    $region11: #{net_forward.1} parent=1 // pred_check_branch
      %38 = sbr.rel (0) target = $region13
    $region12: #{net_forward.1} parent=1 // pred_region
      _
    $region13: #{net_forward.1} parent=1 // pred_fallthru
      _
    // Predicated region
    $region14: #{net_forward.1} parent=1 // pred_check
      _
    $region15: #{net_forward.1} parent=1 // pred_check_branch
      %40 = sbr.rel (0) target = $region17
    $region16: #{net_forward.1} parent=1 // pred_region
      %42 = vsyncadd [#allocation6], 0
      %s43 = sshll.u32 %s3, 4
      %s44 = int_to_ptr.hbm [resolvable:$true] %s43
      %s45 = sshll.u32 [#allocation7], 4
      %s46 = int_to_ptr.vmem [resolvable:$true] %s45
      %51 = dma.hbm_to_vmem [thread:$0]  %s44, 1024, %s46, [#allocation6], 64, 64, 4
    $region17: #{net_forward.1} parent=1 // pred_fallthru
      _
    // Predicated region
    $region18: #{net_forward.1} parent=1 // pred_check
      _
    $region19: #{net_forward.1} parent=1 // pred_check_branch
      %53 = sbr.rel (0) target = $region21
    $region20: #{net_forward.1} parent=1 // pred_region
      _
    $region21: #{net_forward.1} parent=1 // pred_fallthru
      _
    // Predicated region
    $region22: #{net_forward.1} parent=1 // pred_check
      _
    $region23: #{net_forward.1} parent=1 // pred_check_branch
      %55 = sbr.rel (0) target = $region25
    $region24: #{net_forward.1} parent=1 // pred_region
      %57 = dma.done [#allocation3], 128
    $region25: #{net_forward.1} parent=1 // pred_fallthru
      _
    // Predicated region
    $region26: #{net_forward.1} parent=1 // pred_check
      _
    $region27: #{net_forward.1} parent=1 // pred_check_branch
      %59 = sbr.rel (0) target = $region29
    $region28: #{net_forward.1} parent=1 // pred_region
      %61 = dma.done [#allocation6], 256
    $region29: #{net_forward.1} parent=1 // pred_fallthru
      _
    // Predicated region
    $region30: #{net_forward.1} parent=1 // pred_check
      _
    $region31: #{net_forward.1} parent=1 // pred_check_branch
      %63 = sbr.rel (0) target = $region33
    $region32: #{net_forward.1} parent=1 // pred_region
      %65 = dma.done [#allocation6], 1024
    $region33: #{net_forward.1} parent=1 // pred_fallthru
      _
    %v67 = vld [vmem:[#allocation2] sm:$0xff]
    %v68 = vpack.c.bf16 %v67, %v67
    %v69 = vld [vmem:[#allocation5] sm:$0xf]
    %v70 = vld [vmem:[#allocation5 + $0x4] sm:$0xf]
    %v71 = vld [vmem:[#allocation5 + $0x8] sm:$0xf]
    %v72 = vld [vmem:[#allocation5 + $0xc] sm:$0xf]
    %v73 = vld [vmem:[%s2] sm:$0x1]
    %v75 = vperm.slane %v73, 0
    %v81 = vunpack.c.l.b16 %v69
    %v82 = vunpack.c.l.b16 %v70
    %v83 = vunpack.c.l.b16 %v71
    %v84 = vunpack.c.l.b16 %v72
    %v85 = vpack.c.b16 %v82, %v81
    %v86 = vpack.c.b16 %v84, %v83
    %vm89 = vcmask 261120
    %v91 = vsel %vm89, %v68, 0
    %93 = vmatpush.bf16.msra.mxu0 0
    %94 = vmatpush.bf16.msra.mxu0 0
    %95 = vmatpush.bf16.msra.mxu0 0
    %96 = vmatpush.bf16.msra.mxu0 0
    %97 = vmatpush.bf16.msra.mxu0 0
    %98 = vmatpush.bf16.msra.mxu0 0
    %99 = vmatpush.bf16.msra.mxu0 %v86
    %100 = vmatpush.bf16.msra.mxu0 %v85
    %101 = vmatmul.bf16.gmra.mxu0 %v91
    %v102 = vpop.f32.mrf.mxu0
    %v103 = vadd.f32 %v75, %v102
    %v104 = vpop.f32.mrf.mxu0
    %105 = vdwg.mxu0
    %v106 = vmax.f32 %v103, 0.0
    %v107 = vpack.c.bf16 %v106, %v106
    %v108 = vld [vmem:[#allocation7] sm:$0xf]
    %v109 = vld [vmem:[#allocation7 + $0x4] sm:$0xf]
    %v110 = vld [vmem:[#allocation7 + $0x8] sm:$0xf]
    %v111 = vld [vmem:[#allocation7 + $0xc] sm:$0xf]
    %v112 = vld [vmem:[#allocation7 + $0x10] sm:$0xf]
    %v113 = vld [vmem:[#allocation7 + $0x14] sm:$0xf]
    %v114 = vld [vmem:[#allocation7 + $0x18] sm:$0xf]
    %v115 = vld [vmem:[#allocation7 + $0x1c] sm:$0xf]
    %v116 = vld [vmem:[#allocation7 + $0x20] sm:$0xf]
    %v117 = vld [vmem:[#allocation7 + $0x24] sm:$0xf]
    %v118 = vld [vmem:[#allocation7 + $0x28] sm:$0xf]
    %v119 = vld [vmem:[#allocation7 + $0x2c] sm:$0xf]
    %v120 = vld [vmem:[#allocation7 + $0x30] sm:$0xf]
    %v121 = vld [vmem:[#allocation7 + $0x34] sm:$0xf]
    %v122 = vld [vmem:[#allocation7 + $0x38] sm:$0xf]
    %v123 = vld [vmem:[#allocation7 + $0x3c] sm:$0xf]
    %v124 = vld [vmem:[%s4] sm:$0x1]
    %v126 = vperm.slane %v124, 0
    %v144 = vunpack.c.l.b16 %v108
    %v145 = vunpack.c.l.b16 %v109
    %v146 = vunpack.c.l.b16 %v110
    %v147 = vunpack.c.l.b16 %v111
    %v148 = vunpack.c.l.b16 %v112
    %v149 = vunpack.c.l.b16 %v113
    %v150 = vunpack.c.l.b16 %v114
    %v151 = vunpack.c.l.b16 %v115
    %v152 = vunpack.c.l.b16 %v116
    %v153 = vunpack.c.l.b16 %v117
    %v154 = vunpack.c.l.b16 %v118
    %v155 = vunpack.c.l.b16 %v119
    %v156 = vunpack.c.l.b16 %v120
    %v157 = vunpack.c.l.b16 %v121
    %v158 = vunpack.c.l.b16 %v122
    %v159 = vunpack.c.l.b16 %v123
    %v160 = vpack.c.b16 %v145, %v144
    %v161 = vpack.c.b16 %v147, %v146
    %v162 = vpack.c.b16 %v149, %v148
    %v163 = vpack.c.b16 %v151, %v150
    %v164 = vpack.c.b16 %v153, %v152
    %v165 = vpack.c.b16 %v155, %v154
    %v166 = vpack.c.b16 %v157, %v156
    %v167 = vpack.c.b16 %v159, %v158
    %176 = vmatpush.bf16.msra.mxu0 %v167
    %177 = vmatpush.bf16.msra.mxu0 %v166
    %178 = vmatpush.bf16.msra.mxu0 %v165
    %179 = vmatpush.bf16.msra.mxu0 %v164
    %180 = vmatpush.bf16.msra.mxu0 %v163
    %181 = vmatpush.bf16.msra.mxu0 %v162
    %182 = vmatpush.bf16.msra.mxu0 %v161
    %183 = vmatpush.bf16.msra.mxu0 %v160
    %184 = vmatmul.bf16.gmra.mxu0 %v107
    %v185 = vpop.f32.mrf.mxu0
    %v186 = vadd.f32 %v126, %v185
    %v187 = vpop.f32.mrf.mxu0
    %188 = vdwg.mxu0
    %189 = vst [vmem:[#allocation8] sm:$0xff] %v186
    // Predicated region
    $region34: #{net_forward.1} parent=1 // pred_check
      _
    $region35: #{net_forward.1} parent=1 // pred_check_branch
      %191 = sbr.rel (0) target = $region37
    $region36: #{net_forward.1} parent=1 // pred_region
      %193 = vsyncadd [#allocation4], 0
      %s195 = sshll.u32 [#allocation8], 4
      %s196 = int_to_ptr.vmem [resolvable:$true] %s195
      %s197 = sshll.u32 %s5, 4
      %s198 = int_to_ptr.hbm [resolvable:$true] %s197
      %200 = dma.vmem_to_hbm [thread:$0]  %s196, 128, %s198, [#allocation4]
    $region37: #{net_forward.1} parent=1 // pred_fallthru
      _
    // Predicated region
    $region38: #{net_forward.1} parent=1 // pred_check
      _
    $region39: #{net_forward.1} parent=1 // pred_check_branch
      %202 = sbr.rel (0) target = $region41
    $region40: #{net_forward.1} parent=1 // pred_region
      %204 = dma.done [#allocation4], 128
    $region41: #{net_forward.1} parent=1 // pred_fallthru
      _
    %205 = vsyncpa [#allocation3], 1
    %206 = vsyncpa [#allocation6], 1
    %207 = vsyncpa [#allocation4], 1

</llo_original>
